<compile_context>
chip_gen: v5e
topology: v5e:2x2
jax: 0.10.0
libtpu: 0.0.40
codegen_flags: <defaults>
</compile_context>

<pallas_src>
import jax
import jax.numpy as jnp
from jax import lax
from jax.experimental import pallas as pl
from jax.experimental.pallas import tpu as pltpu


def _soft_select_kernel(support_ref, query_ref, center_ref):
    support = support_ref[...]            # [few, dim], native dtype (MXU-friendly)
    query = query_ref[...]                # [TB,  dim], native dtype

    dim = support.shape[1]
    scale = jnp.float32(dim ** (-0.5))

    # score[b, f] = <query[b], support[f]> * scale.  Contract on the feature
    # axis so `support` is consumed in its stored [few, dim] layout -- no XLU
    # transpose / relayout per grid step.  Accumulate in f32 on the MXU.
    score = lax.dot_general(
        query, support,
        dimension_numbers=(((1,), (1,)), ((), ())),
        preferred_element_type=jnp.float32,
    ) * scale                                            # [TB, few], f32

    # Numerically stable softmax over the `few` axis (axis=1), all in f32.
    m = jnp.max(score, axis=1, keepdims=True)
    p = jnp.exp(score - m)
    denom = jnp.sum(p, axis=1, keepdims=True)
    inv = 1.0 / denom                      # exact: one divide per row ([TB, 1])
    att = p * inv                          # rows sum to 1 (parity with torch.softmax)

    # center = att @ support -> [TB, dim].  MXU operands in support's dtype
    # (no-op for f32 inputs), f32 accumulation, single cast at the store.
    center = jnp.dot(att.astype(support.dtype), support,
                     preferred_element_type=jnp.float32)
    center_ref[...] = center.astype(center_ref.dtype)


def _vmem_budgets():
    """Returns (streamed-tile budget, scoped-VMEM cap) sized per TPU generation."""
    try:
        phys = int(pltpu.get_tpu_info().vmem_capacity_bytes)
    except Exception:
        phys = 64 << 20          # no TPU visible / interpret -> assume tightest (v7x)
    # ~3/8 of physical VMEM for the streamed tiles: ~24 MiB on v7x (64 MiB),
    # ~48 MiB on v5e/v6e (128 MiB).  The scoped *defaults* (16/32 MiB) do not
    # bind because vmem_limit_bytes is set explicitly from the chosen tiles.
    tile_budget = min(max(12 << 20, (phys * 3) // 8), 48 << 20)
    limit_cap = (phys * 7) // 8            # stay well below physical VMEM
    return tile_budget, limit_cap


def _choose_batch_tile(batch, few, dim, itemsize, budget):
    """Largest sublane-aligned batch tile whose full VMEM footprint (streamed
    query/center double buffers + f32 intermediates + resident support) fits
    `budget`.  Bigger tiles amortize the ~0.35 us per-grid-step overhead."""
    lane_few = max(few, 128)                    # [TB, few] f32 temps pad to 128 lanes
    per_row = (4 * dim * itemsize               # query + center tiles, double-buffered
               + 4 * dim                        # f32 center accumulator before the cast
               + 3 * 4 * lane_few)              # f32 score / exp / att temporaries
    fixed = 2 * few * dim * itemsize            # resident support (2 buffers, worst case)
    tb = (budget - fixed) // max(per_row, 1)
    tb = max(8, min(8192, (tb // 8) * 8))       # cap raised from 1024 -> 8192
    return tb


def soft_select_prototype(support: jax.Array, query: jax.Array,
                          *, batch_tile: int | None = None) -> jax.Array:
    """support: [few, dim], query: [batch, dim] -> center: [batch, dim]."""
    few, dim = support.shape
    batch, dim_q = query.shape
    if dim != dim_q:
        raise ValueError("support and query must share the feature dimension")

    itemsize = jnp.dtype(query.dtype).itemsize
    tile_budget, limit_cap = _vmem_budgets()
    tb = batch_tile if batch_tile is not None else _choose_batch_tile(
        batch, few, dim, itemsize, tile_budget)

    if tb >= batch:
        # Single block covering the whole batch: block shape == full array dims
        # is always legal, so no alignment rounding or padding is needed.
        tb, steps, padded_batch = batch, 1, batch
    else:
        tb = max(8, (tb // 8) * 8)              # multi-block tiles need 8-row alignment
        steps = pl.cdiv(batch, tb)
        if batch_tile is None and steps > 1 and steps % 2 == 1:
            # v7x megacore: even grid-step count keeps both TensorCores busy.
            steps += 1
            tb = max(8, ((pl.cdiv(batch, steps) + 7) // 8) * 8)
        # Pad the batch so every block is fully in bounds: no partial tail
        # block means no masked/undefined rows anywhere in the pipeline.
        padded_batch = steps * tb

    query_in = (query if padded_batch == batch
                else jnp.pad(query, ((0, padded_batch - batch), (0, 0))))

    # Explicit scoped-VMEM limit sized from what this kernel actually allocates
    # (streamed tiles, f32 intermediates, resident support) plus headroom.
    lane_few = max(few, 128)
    accounted = (4 * tb * dim * itemsize + 4 * tb * dim + 12 * tb * lane_few
                 + 2 * few * dim * itemsize)
    vmem_limit = int(min(max(accounted + (4 << 20), 16 << 20), limit_cap))

    cost = pl.CostEstimate(
        flops=4 * padded_batch * few * dim,          # two matmuls
        transcendentals=padded_batch * few,          # softmax exp
        bytes_accessed=(2 * padded_batch * dim + few * dim) * itemsize,
    )

    # TODO(synk): for dim < 128 the center block is lane-sparse (masked stores);
    # fixing it needs interface changes (fold episodes/heads into the feature
    # axis).  Likewise, a flash-style grid over `few` would be needed only if
    # few*dim ever outgrew resident VMEM (v7x: 64 MiB) -- not the case for
    # few-shot prototype sizes.
    def _call(support_spec):
        return pl.pallas_call(
            _soft_select_kernel,
            out_shape=jax.ShapeDtypeStruct((padded_batch, dim), query.dtype),
            grid_spec=pl.GridSpec(
                grid=(steps,),
                in_specs=[
                    support_spec,                                   # resident
                    pl.BlockSpec((tb, dim), lambda i: (i, 0)),      # query: streamed
                ],
                out_specs=pl.BlockSpec((tb, dim), lambda i: (i, 0)),
            ),
            compiler_params=pltpu.CompilerParams(
                dimension_semantics=("parallel",),   # megacore-split the batch axis
                vmem_limit_bytes=vmem_limit,
            ),
            cost_estimate=cost,
        )(support, query_in)

    try:
        # Support's block index never changes, so one buffer suffices; the
        # saved few*dim bytes go toward larger streamed tiles.
        center = _call(pl.BlockSpec((few, dim), lambda i: (0, 0),
                                    pipeline_mode=pl.Buffered(1)))
    except Exception:
        # Fallback for toolchains/interpreters without single-buffer support.
        center = _call(pl.BlockSpec((few, dim), lambda i: (0, 0)))

    return center if padded_batch == batch else center[:batch]


def _reference(support, query):
    scale = support.shape[1] ** (-0.5)
    score = jnp.dot(query, support.T, precision=lax.Precision.HIGHEST) * scale
    att = jax.nn.softmax(score, axis=1)
    return jnp.dot(att, support, precision=lax.Precision.HIGHEST)


if __name__ == "__main__":
    key = jax.random.PRNGKey(0)
    k_sup, k_qry, k_sup2, k_qry2 = jax.random.split(key, 4)

    # Small shapes consistent with the module (few-shot prototypes): one block.
    few, batch, dim = 8, 2, 32
    support = jax.random.normal(k_sup, (few, dim), dtype=jnp.float32)
    query = jax.random.normal(k_qry, (batch, dim), dtype=jnp.float32)

    center = jax.block_until_ready(soft_select_prototype(support, query))
    ref = _reference(support, query)
    assert center.shape == (batch, dim)
    assert jnp.allclose(center, ref, atol=1e-3, rtol=1e-3), \
        "mismatch vs reference (single block)"

    # Batch-tiled path: batch not a multiple of the tile -> exercises the
    # wrapper-side padding (grid of full blocks, result sliced back to batch).
    few2, batch2, dim2 = 8, 20, 32
    support2 = jax.random.normal(k_sup2, (few2, dim2), dtype=jnp.float32)
    query2 = jax.random.normal(k_qry2, (batch2, dim2), dtype=jnp.float32)

    center2 = jax.block_until_ready(
        soft_select_prototype(support2, query2, batch_tile=8))
    ref2 = _reference(support2, query2)
    assert center2.shape == (batch2, dim2)
    assert jnp.allclose(center2, ref2, atol=1e-3, rtol=1e-3), \
        "mismatch vs reference (tiled)"

    print("KERNEL_OK")
</pallas_src>

<mosaic_0001>
module attributes {stable_mosaic.version = 11 : i64} {
  func.func @_soft_select_kernel(%arg0: i32, %arg1: memref<8x32xf32, #tpu.memory_space<vmem>>, %arg2: memref<2x32xf32, #tpu.memory_space<vmem>>, %arg3: memref<2x32xf32, #tpu.memory_space<vmem>>) attributes {dimension_semantics = [#tpu.dimension_semantics<parallel>], iteration_bounds = array<i64: 1>, scalar_prefetch = 0 : i64, scratch_operands = 0 : i64, tpu.core_type = #tpu.core_type<tc>, window_params = [{pipeline_mode = #tpu.pipeline_mode<synchronous>, transform_indices = @transform_0, window_bounds = array<i64: 8, 32>}, {transform_indices = @transform_1, window_bounds = array<i64: 2, 32>}, {transform_indices = @transform_2, window_bounds = array<i64: 2, 32>}]} {
    %c0 = arith.constant 0 : index
    %c0_0 = arith.constant 0 : index
    %0 = vector.load %arg1[%c0, %c0_0] : memref<8x32xf32, #tpu.memory_space<vmem>>, vector<8x32xf32>
    %c0_1 = arith.constant 0 : index
    %c0_2 = arith.constant 0 : index
    %1 = vector.load %arg2[%c0_1, %c0_2] : memref<2x32xf32, #tpu.memory_space<vmem>>, vector<2x32xf32>
    %cst = arith.constant dense<0.000000e+00> : vector<2x8xf32>
    %2 = tpu.matmul %1, %0, %cst {dimension_numbers = #tpu.dot_dimension_numbers<[1], [1], [0], [0], [0, 0, 1, 0], [], []>} : vector<2x32xf32>, vector<8x32xf32>, vector<2x8xf32> -> vector<2x8xf32>
    %cst_3 = arith.constant 0.176776692 : f32
    %3 = vector.broadcast %cst_3 : f32 to vector<2x8xf32>
    %4 = arith.mulf %2, %3 : vector<2x8xf32>
    %cst_4 = arith.constant dense<0xFF800000> : vector<2xf32>
    %5 = vector.multi_reduction <maximumf>, %4, %cst_4 [1] : vector<2x8xf32> to vector<2xf32>
    %6 = vector.shape_cast %5 : vector<2xf32> to vector<2x1xf32>
    %7 = vector.broadcast %6 : vector<2x1xf32> to vector<2x8xf32>
    %8 = arith.subf %4, %7 : vector<2x8xf32>
    %9 = math.exp %8 : vector<2x8xf32>
    %cst_5 = arith.constant dense<0.000000e+00> : vector<2xf32>
    %10 = vector.multi_reduction <add>, %9, %cst_5 [1] : vector<2x8xf32> to vector<2xf32>
    %11 = vector.shape_cast %10 : vector<2xf32> to vector<2x1xf32>
    %cst_6 = arith.constant 1.000000e+00 : f32
    %12 = vector.broadcast %cst_6 : f32 to vector<2x1xf32>
    %13 = arith.divf %12, %11 : vector<2x1xf32>
    %14 = vector.broadcast %13 : vector<2x1xf32> to vector<2x8xf32>
    %15 = arith.mulf %9, %14 : vector<2x8xf32>
    %cst_7 = arith.constant dense<0.000000e+00> : vector<2x32xf32>
    %16 = tpu.matmul %15, %0, %cst_7 {dimension_numbers = #tpu.dot_dimension_numbers<[1], [0], [0], [1], [0, 0, 1, 1], [], []>} : vector<2x8xf32>, vector<8x32xf32>, vector<2x32xf32> -> vector<2x32xf32>
    %c0_8 = arith.constant 0 : index
    %c0_9 = arith.constant 0 : index
    %17 = vector.load %arg3[%c0_8, %c0_9] : memref<2x32xf32, #tpu.memory_space<vmem>>, vector<2x32xf32>
    tpu.vector_store %arg3[%c0_8, %c0_9], %16 {strides = array<i32>} : memref<2x32xf32, #tpu.memory_space<vmem>>, vector<2x32xf32>,
    return
  }
  func.func @transform_0(%arg0: i32) -> (i32, i32) {
    %c0_i32 = arith.constant 0 : i32
    %c0_i32_0 = arith.constant 0 : i32
    %c0_i32_1 = arith.constant 0 : i32
    return %c0_i32, %c0_i32_0 : i32, i32
  }
  func.func @transform_1(%arg0: i32) -> (i32, i32) {
    %c0_i32 = arith.constant 0 : i32
    %c0_i32_0 = arith.constant 0 : i32
    return %arg0, %c0_i32 : i32, i32
  }
  func.func @transform_2(%arg0: i32) -> (i32, i32) {
    %c0_i32 = arith.constant 0 : i32
    %c0_i32_0 = arith.constant 0 : i32
    return %arg0, %c0_i32 : i32, i32
  }
}

module attributes {stable_mosaic.version = 11 : i64} {
  func.func @_soft_select_kernel(%arg0: i32, %arg1: memref<8x32xf32, #tpu.memory_space<vmem>>, %arg2: memref<2x32xf32, #tpu.memory_space<vmem>>, %arg3: memref<2x32xf32, #tpu.memory_space<vmem>>) attributes {dimension_semantics = [#tpu.dimension_semantics<parallel>], iteration_bounds = array<i64: 1>, scalar_prefetch = 0 : i64, scratch_operands = 0 : i64, tpu.core_type = #tpu.core_type<tc>, window_params = [{pipeline_mode = #tpu.pipeline_mode<synchronous>, transform_indices = @transform_0, window_bounds = array<i64: 8, 32>}, {transform_indices = @transform_1, window_bounds = array<i64: 2, 32>}, {transform_indices = @transform_2, window_bounds = array<i64: 2, 32>}]} {
    %c0 = arith.constant 0 : index
    %c0_0 = arith.constant 0 : index
    %0 = vector.load %arg1[%c0, %c0_0] : memref<8x32xf32, #tpu.memory_space<vmem>>, vector<8x32xf32>
    %c0_1 = arith.constant 0 : index
    %c0_2 = arith.constant 0 : index
    %1 = vector.load %arg2[%c0_1, %c0_2] : memref<2x32xf32, #tpu.memory_space<vmem>>, vector<2x32xf32>
    %cst = arith.constant dense<0.000000e+00> : vector<2x8xf32>
    %2 = tpu.matmul %1, %0, %cst {dimension_numbers = #tpu.dot_dimension_numbers<[1], [1], [0], [0], [0, 0, 1, 0], [], []>} : vector<2x32xf32>, vector<8x32xf32>, vector<2x8xf32> -> vector<2x8xf32>
    %cst_3 = arith.constant 0.176776692 : f32
    %3 = vector.broadcast %cst_3 : f32 to vector<2x8xf32>
    %4 = arith.mulf %2, %3 : vector<2x8xf32>
    %cst_4 = arith.constant dense<0xFF800000> : vector<2xf32>
    %5 = vector.multi_reduction <maximumf>, %4, %cst_4 [1] : vector<2x8xf32> to vector<2xf32>
    %6 = vector.shape_cast %5 : vector<2xf32> to vector<2x1xf32>
    %7 = vector.broadcast %6 : vector<2x1xf32> to vector<2x8xf32>
    %8 = arith.subf %4, %7 : vector<2x8xf32>
    %9 = math.exp %8 : vector<2x8xf32>
    %cst_5 = arith.constant dense<0.000000e+00> : vector<2xf32>
    %10 = vector.multi_reduction <add>, %9, %cst_5 [1] : vector<2x8xf32> to vector<2xf32>
    %11 = vector.shape_cast %10 : vector<2xf32> to vector<2x1xf32>
    %cst_6 = arith.constant 1.000000e+00 : f32
    %12 = vector.broadcast %cst_6 : f32 to vector<2x1xf32>
    %13 = arith.divf %12, %11 : vector<2x1xf32>
    %14 = vector.broadcast %13 : vector<2x1xf32> to vector<2x8xf32>
    %15 = arith.mulf %9, %14 : vector<2x8xf32>
    %cst_7 = arith.constant dense<0.000000e+00> : vector<2x32xf32>
    %16 = tpu.matmul %15, %0, %cst_7 {dimension_numbers = #tpu.dot_dimension_numbers<[1], [0], [0], [1], [0, 0, 1, 1], [], []>} : vector<2x8xf32>, vector<8x32xf32>, vector<2x32xf32> -> vector<2x32xf32>
    %c0_8 = arith.constant 0 : index
    %c0_9 = arith.constant 0 : index
    %17 = vector.load %arg3[%c0_8, %c0_9] : memref<2x32xf32, #tpu.memory_space<vmem>>, vector<2x32xf32>
    tpu.vector_store %arg3[%c0_8, %c0_9], %16 {strides = array<i32>} : memref<2x32xf32, #tpu.memory_space<vmem>>, vector<2x32xf32>,
    return
  }
  func.func @transform_0(%arg0: i32) -> (i32, i32) {
    %c0_i32 = arith.constant 0 : i32
    %c0_i32_0 = arith.constant 0 : i32
    %c0_i32_1 = arith.constant 0 : i32
    return %c0_i32, %c0_i32_0 : i32, i32
  }
  func.func @transform_1(%arg0: i32) -> (i32, i32) {
    %c0_i32 = arith.constant 0 : i32
    %c0_i32_0 = arith.constant 0 : i32
    return %arg0, %c0_i32 : i32, i32
  }
  func.func @transform_2(%arg0: i32) -> (i32, i32) {
    %c0_i32 = arith.constant 0 : i32
    %c0_i32_0 = arith.constant 0 : i32
    return %arg0, %c0_i32 : i32, i32
  }
}

</mosaic_0001>

<llo_original>
// kernel: tpu_custom_call.1
$region0: #{tpu_custom_call.1}
  #allocation0 [shape = 'u32[]', space=smem, size = 0x4, offset = 0x4, fixed_abs, tag = 'smem constant byte address 0x4 - core index']
  #allocation1 [shape = 'u32[72,128]{1,0:T(1,128)}', space=vmem, size = 0x9000, scoped, tag = 'internal scratch']
  %s0 = inlined_call_operand.hbm [shape: f32[8,32], index: 0, kind: input, shape index: {}]
  %s1 = inlined_call_operand.hbm [shape: f32[2,32], index: 1, kind: input, shape index: {}]
  %s2 = inlined_call_operand.hbm [shape: f32[2,32], index: 2, kind: output, shape index: {}]
  %s3 = sld [smem:[#allocation0]]
  $region26: #{tpu_custom_call.1} parent=0
    _
  %s5 = ssub.s32 1, %s3
  %s6 = scalar_select 0, %s5, %s3
  $region1: #{tpu_custom_call.1} parent=0
    #allocation2 [shape = 'u8[4096]{0}', space=vmem, size = 0x1000, scoped, tag = 'input window, operand 0, single buffered']
    #allocation3 [shape = 's32[1]{0}', space=sflag, size = 0x4, scoped, tag = 'scoped memory for tpu_custom_call.1']
    #allocation4 [shape = 's32[1]{0}', space=sflag, size = 0x4, scoped, tag = 'scoped memory for tpu_custom_call.1']
    #allocation5 [shape = 'u8[1024]{0}', space=vmem, size = 0x400, scoped, tag = 'input window, operand 1, single buffered']
    #allocation6 [shape = 's32[1]{0}', space=sflag, size = 0x4, scoped, tag = 'scoped memory for tpu_custom_call.1']
    #allocation7 [shape = 'u8[1024]{0}', space=vmem, size = 0x400, scoped, tag = 'output window, operand 0, single buffered']
    %7 = vsyncpa [#allocation3], 0
    %8 = vsyncpa [#allocation6], 0
    %9 = vsyncpa [#allocation4], 0
    // Predicated region
    $region2: #{tpu_custom_call.1} parent=1 // pred_check
      _
    $region3: #{tpu_custom_call.1} parent=1 // pred_check_branch
      %11 = sbr.rel (0) target = $region5
    $region4: #{tpu_custom_call.1} parent=1 // pred_region
      %13 = vsyncadd [#allocation3], 0
      %s15 = sshll.u32 %s0, 4
      %s16 = int_to_ptr.hbm [resolvable:$true] %s15
      %s17 = sshll.u32 [#allocation2], 4
      %s18 = int_to_ptr.vmem [resolvable:$true] %s17
      %20 = dma.hbm_to_vmem [thread:$0]  %s16, 128, %s18, [#allocation3]
    $region5: #{tpu_custom_call.1} parent=1 // pred_fallthru
      _
    // Predicated region
    $region6: #{tpu_custom_call.1} parent=1 // pred_check
      _
    $region7: #{tpu_custom_call.1} parent=1 // pred_check_branch
      %22 = sbr.rel (0) target = $region9
    $region8: #{tpu_custom_call.1} parent=1 // pred_region
      %24 = vsyncadd [#allocation6], 0
      %s26 = sshll.u32 %s1, 4
      %s27 = int_to_ptr.hbm [resolvable:$true] %s26
      %s28 = sshll.u32 [#allocation5], 4
      %s29 = int_to_ptr.vmem [resolvable:$true] %s28
      %31 = dma.hbm_to_vmem [thread:$0]  %s27, 32, %s29, [#allocation6]
    $region9: #{tpu_custom_call.1} parent=1 // pred_fallthru
      _
    // Predicated region
    $region10: #{tpu_custom_call.1} parent=1 // pred_check
      _
    $region11: #{tpu_custom_call.1} parent=1 // pred_check_branch
      %33 = sbr.rel (0) target = $region13
    $region12: #{tpu_custom_call.1} parent=1 // pred_region
      %35 = dma.done [#allocation3], 128
    $region13: #{tpu_custom_call.1} parent=1 // pred_fallthru
      _
    // Predicated region
    $region14: #{tpu_custom_call.1} parent=1 // pred_check
      _
    $region15: #{tpu_custom_call.1} parent=1 // pred_check_branch
      %37 = sbr.rel (0) target = $region17
    $region16: #{tpu_custom_call.1} parent=1 // pred_region
      %39 = dma.done [#allocation6], 32
    $region17: #{tpu_custom_call.1} parent=1 // pred_fallthru
      _
    %v40 = vld [vmem:[#allocation2] sm:$0xff]
    %v41 = vld [vmem:[#allocation5] sm:$0x3]
    %vm42 = vcmask 261120
    %v44 = vsel %vm42, %v41, 0
    %v47 = vsel %vm42, %v40, 0
    %49 = vmatpush.xpose.msra.mxu0 0.0
    %50 = vmatpush.xpose.msra.mxu0 0.0
    %51 = vmatpush.xpose.msra.mxu0 0.0
    %52 = vmatpush.xpose.msra.mxu0 0.0
    %53 = vmatpush.xpose.msra.mxu0 0.0
    %54 = vmatpush.xpose.msra.mxu0 0.0
    %55 = vmatpush.xpose.msra.mxu0 0.0
    %56 = vmatpush.xpose.msra.mxu0 0.0
    %57 = vmatpush.xpose.msra.mxu0 0.0
    %58 = vmatpush.xpose.msra.mxu0 0.0
    %59 = vmatpush.xpose.msra.mxu0 0.0
    %60 = vmatpush.xpose.msra.mxu0 0.0
    %61 = vmatpush.xpose.msra.mxu0 0.0
    %62 = vmatpush.xpose.msra.mxu0 0.0
    %63 = vmatpush.xpose.msra.mxu0 0.0
    %64 = vmatpush.xpose.msra.mxu0 %v47
    %65 = vmatmul.f32.gmra.mxu0 %v44
    %v66 = vpop.f32.mrf.mxu0
    %v67 = vadd.f32 0.0, %v66
    %68 = vdwg.mxu0
    %v69 = vmul.f32 %v67, 0.17677669
    %vm70 = vcmask 58368
    %v71 = vsel %vm70, %v69, -inf
    %72 = vmax.xlane.f32.xlu0 %v71
    %v73 = vpop.xlane.xlu0 %72
    %v74 = vsub.f32 %v69, %v73
    %v75 = vmul.f32 %v74, 1.442695
    %v76 = vpow.pop %v75
    %v77 = vsel %vm70, %v76, 0.0
    %78 = vadd.xlane.f32.xlu0 %v77
    %v79 = vpop.xlane.xlu0 %78
    %v80 = vrcp.pop %v79
    %v81 = vmul.f32 %v79, %v80
    %v82 = vsub.f32 1.0, %v81
    %v83 = vmul.f32 %v80, %v82
    %v84 = vadd.f32 %v80, %v83
    %vm85 = vweird.f32 %v79
    %vm86 = vweird.f32 %v80
    %vm87 = vmor %vm85, %vm86
    %v88 = vsel %vm87, %v80, %v84
    %v89 = vand.u32 2147483647, %v79
    %vm90 = vcmp.eq.f32.partialorder %v89, 8.507059e+37
    %v91 = vand.u32 %v79, 2147483648
    %v92 = vor.u32 1.1754944e-38, %v91
    %v93 = vsel %vm90, %v92, %v88
    %v94 = vmul.f32 1.0, %v93
    %v95 = vmul.f32 %v76, %v94
    %vm96 = vcmask 64512
    %v98 = vsel %vm96, %v95, 0
    %100 = vmatpush.msra.mxu0 0.0
    %101 = vmatpush.msra.mxu0 0.0
    %102 = vmatpush.msra.mxu0 0.0
    %103 = vmatpush.msra.mxu0 0.0
    %104 = vmatpush.msra.mxu0 0.0
    %105 = vmatpush.msra.mxu0 0.0
    %106 = vmatpush.msra.mxu0 0.0
    %107 = vmatpush.msra.mxu0 0.0
    %108 = vmatpush.msra.mxu0 0.0
    %109 = vmatpush.msra.mxu0 0.0
    %110 = vmatpush.msra.mxu0 0.0
    %111 = vmatpush.msra.mxu0 0.0
    %112 = vmatpush.msra.mxu0 0.0
    %113 = vmatpush.msra.mxu0 0.0
    %114 = vmatpush.msra.mxu0 0.0
    %115 = vmatpush.msra.mxu0 %v40
    %116 = vmatmul.f32.gmra.mxu0 %v98
    %v117 = vpop.f32.mrf.mxu0
    %v118 = vadd.f32 0.0, %v117
    %119 = vdwg.mxu0
    %vm120 = vcmask 254976
    %121 = vst.msk [vmem:[#allocation7] sm:$0x3] %vm120, %v118
    // Predicated region
    $region18: #{tpu_custom_call.1} parent=1 // pred_check
      _
    $region19: #{tpu_custom_call.1} parent=1 // pred_check_branch
      %123 = sbr.rel (0) target = $region21
    $region20: #{tpu_custom_call.1} parent=1 // pred_region
      %125 = vsyncadd [#allocation4], 0
      %s127 = sshll.u32 [#allocation7], 4
      %s128 = int_to_ptr.vmem [resolvable:$true] %s127
      %s129 = sshll.u32 %s2, 4
      %s130 = int_to_ptr.hbm [resolvable:$true] %s129
      %132 = dma.vmem_to_hbm [thread:$0]  %s128, 32, %s130, [#allocation4]
    $region21: #{tpu_custom_call.1} parent=1 // pred_fallthru
      _
    // Predicated region
    $region22: #{tpu_custom_call.1} parent=1 // pred_check
      _
    $region23: #{tpu_custom_call.1} parent=1 // pred_check_branch
      %134 = sbr.rel (0) target = $region25
    $region24: #{tpu_custom_call.1} parent=1 // pred_region
      %136 = dma.done [#allocation4], 32
    $region25: #{tpu_custom_call.1} parent=1 // pred_fallthru
      _
    %137 = vsyncpa [#allocation3], 1
    %138 = vsyncpa [#allocation6], 1
    %139 = vsyncpa [#allocation4], 1

// kernel: tpu_custom_call.1
$region0: #{tpu_custom_call.1}
  #allocation0 [shape = 'u32[]', space=smem, size = 0x4, offset = 0x4, fixed_abs, tag = 'smem constant byte address 0x4 - core index']
  #allocation1 [shape = 'u32[72,128]{1,0:T(1,128)}', space=vmem, size = 0x9000, scoped, tag = 'internal scratch']
  %s0 = inlined_call_operand.hbm [shape: f32[8,32], index: 0, kind: input, shape index: {}]
  %s1 = inlined_call_operand.hbm [shape: f32[2,32], index: 1, kind: input, shape index: {}]
  %s2 = inlined_call_operand.hbm [shape: f32[2,32], index: 2, kind: output, shape index: {}]
  %s3 = sld [smem:[#allocation0]]
  $region26: #{tpu_custom_call.1} parent=0
    _
  %s5 = ssub.s32 1, %s3
  %s6 = scalar_select 0, %s5, %s3
  $region1: #{tpu_custom_call.1} parent=0
    #allocation2 [shape = 'u8[4096]{0}', space=vmem, size = 0x1000, scoped, tag = 'input window, operand 0, single buffered']
    #allocation3 [shape = 's32[1]{0}', space=sflag, size = 0x4, scoped, tag = 'scoped memory for tpu_custom_call.1']
    #allocation4 [shape = 's32[1]{0}', space=sflag, size = 0x4, scoped, tag = 'scoped memory for tpu_custom_call.1']
    #allocation5 [shape = 'u8[1024]{0}', space=vmem, size = 0x400, scoped, tag = 'input window, operand 1, single buffered']
    #allocation6 [shape = 's32[1]{0}', space=sflag, size = 0x4, scoped, tag = 'scoped memory for tpu_custom_call.1']
    #allocation7 [shape = 'u8[1024]{0}', space=vmem, size = 0x400, scoped, tag = 'output window, operand 0, single buffered']
    %7 = vsyncpa [#allocation3], 0
    %8 = vsyncpa [#allocation6], 0
    %9 = vsyncpa [#allocation4], 0
    // Predicated region
    $region2: #{tpu_custom_call.1} parent=1 // pred_check
      _
    $region3: #{tpu_custom_call.1} parent=1 // pred_check_branch
      %11 = sbr.rel (0) target = $region5
    $region4: #{tpu_custom_call.1} parent=1 // pred_region
      %13 = vsyncadd [#allocation3], 0
      %s15 = sshll.u32 %s0, 4
      %s16 = int_to_ptr.hbm [resolvable:$true] %s15
      %s17 = sshll.u32 [#allocation2], 4
      %s18 = int_to_ptr.vmem [resolvable:$true] %s17
      %20 = dma.hbm_to_vmem [thread:$0]  %s16, 128, %s18, [#allocation3]
    $region5: #{tpu_custom_call.1} parent=1 // pred_fallthru
      _
    // Predicated region
    $region6: #{tpu_custom_call.1} parent=1 // pred_check
      _
    $region7: #{tpu_custom_call.1} parent=1 // pred_check_branch
      %22 = sbr.rel (0) target = $region9
    $region8: #{tpu_custom_call.1} parent=1 // pred_region
      %24 = vsyncadd [#allocation6], 0
      %s26 = sshll.u32 %s1, 4
      %s27 = int_to_ptr.hbm [resolvable:$true] %s26
      %s28 = sshll.u32 [#allocation5], 4
      %s29 = int_to_ptr.vmem [resolvable:$true] %s28
      %31 = dma.hbm_to_vmem [thread:$0]  %s27, 32, %s29, [#allocation6]
    $region9: #{tpu_custom_call.1} parent=1 // pred_fallthru
      _
    // Predicated region
    $region10: #{tpu_custom_call.1} parent=1 // pred_check
      _
    $region11: #{tpu_custom_call.1} parent=1 // pred_check_branch
      %33 = sbr.rel (0) target = $region13
    $region12: #{tpu_custom_call.1} parent=1 // pred_region
      %35 = dma.done [#allocation3], 128
    $region13: #{tpu_custom_call.1} parent=1 // pred_fallthru
      _
    // Predicated region
    $region14: #{tpu_custom_call.1} parent=1 // pred_check
      _
    $region15: #{tpu_custom_call.1} parent=1 // pred_check_branch
      %37 = sbr.rel (0) target = $region17
    $region16: #{tpu_custom_call.1} parent=1 // pred_region
      %39 = dma.done [#allocation6], 32
    $region17: #{tpu_custom_call.1} parent=1 // pred_fallthru
      _
    %v40 = vld [vmem:[#allocation2] sm:$0xff]
    %v41 = vld [vmem:[#allocation5] sm:$0x3]
    %vm42 = vcmask 261120
    %v44 = vsel %vm42, %v41, 0
    %v47 = vsel %vm42, %v40, 0
    %49 = vmatpush.xpose.msra.mxu0 0.0
    %50 = vmatpush.xpose.msra.mxu0 0.0
    %51 = vmatpush.xpose.msra.mxu0 0.0
    %52 = vmatpush.xpose.msra.mxu0 0.0
    %53 = vmatpush.xpose.msra.mxu0 0.0
    %54 = vmatpush.xpose.msra.mxu0 0.0
    %55 = vmatpush.xpose.msra.mxu0 0.0
    %56 = vmatpush.xpose.msra.mxu0 0.0
    %57 = vmatpush.xpose.msra.mxu0 0.0
    %58 = vmatpush.xpose.msra.mxu0 0.0
    %59 = vmatpush.xpose.msra.mxu0 0.0
    %60 = vmatpush.xpose.msra.mxu0 0.0
    %61 = vmatpush.xpose.msra.mxu0 0.0
    %62 = vmatpush.xpose.msra.mxu0 0.0
    %63 = vmatpush.xpose.msra.mxu0 0.0
    %64 = vmatpush.xpose.msra.mxu0 %v47
    %65 = vmatmul.f32.gmra.mxu0 %v44
    %v66 = vpop.f32.mrf.mxu0
    %v67 = vadd.f32 0.0, %v66
    %68 = vdwg.mxu0
    %v69 = vmul.f32 %v67, 0.17677669
    %vm70 = vcmask 58368
    %v71 = vsel %vm70, %v69, -inf
    %72 = vmax.xlane.f32.xlu0 %v71
    %v73 = vpop.xlane.xlu0 %72
    %v74 = vsub.f32 %v69, %v73
    %v75 = vmul.f32 %v74, 1.442695
    %v76 = vpow.pop %v75
    %v77 = vsel %vm70, %v76, 0.0
    %78 = vadd.xlane.f32.xlu0 %v77
    %v79 = vpop.xlane.xlu0 %78
    %v80 = vrcp.pop %v79
    %v81 = vmul.f32 %v79, %v80
    %v82 = vsub.f32 1.0, %v81
    %v83 = vmul.f32 %v80, %v82
    %v84 = vadd.f32 %v80, %v83
    %vm85 = vweird.f32 %v79
    %vm86 = vweird.f32 %v80
    %vm87 = vmor %vm85, %vm86
    %v88 = vsel %vm87, %v80, %v84
    %v89 = vand.u32 2147483647, %v79
    %vm90 = vcmp.eq.f32.partialorder %v89, 8.507059e+37
    %v91 = vand.u32 %v79, 2147483648
    %v92 = vor.u32 1.1754944e-38, %v91
    %v93 = vsel %vm90, %v92, %v88
    %v94 = vmul.f32 1.0, %v93
    %v95 = vmul.f32 %v76, %v94
    %vm96 = vcmask 64512
    %v98 = vsel %vm96, %v95, 0
    %100 = vmatpush.msra.mxu0 0.0
    %101 = vmatpush.msra.mxu0 0.0
    %102 = vmatpush.msra.mxu0 0.0
    %103 = vmatpush.msra.mxu0 0.0
    %104 = vmatpush.msra.mxu0 0.0
    %105 = vmatpush.msra.mxu0 0.0
    %106 = vmatpush.msra.mxu0 0.0
    %107 = vmatpush.msra.mxu0 0.0
    %108 = vmatpush.msra.mxu0 0.0
    %109 = vmatpush.msra.mxu0 0.0
    %110 = vmatpush.msra.mxu0 0.0
    %111 = vmatpush.msra.mxu0 0.0
    %112 = vmatpush.msra.mxu0 0.0
    %113 = vmatpush.msra.mxu0 0.0
    %114 = vmatpush.msra.mxu0 0.0
    %115 = vmatpush.msra.mxu0 %v40
    %116 = vmatmul.f32.gmra.mxu0 %v98
    %v117 = vpop.f32.mrf.mxu0
    %v118 = vadd.f32 0.0, %v117
    %119 = vdwg.mxu0
    %vm120 = vcmask 254976
    %121 = vst.msk [vmem:[#allocation7] sm:$0x3] %vm120, %v118
    // Predicated region
    $region18: #{tpu_custom_call.1} parent=1 // pred_check
      _
    $region19: #{tpu_custom_call.1} parent=1 // pred_check_branch
      %123 = sbr.rel (0) target = $region21
    $region20: #{tpu_custom_call.1} parent=1 // pred_region
      %125 = vsyncadd [#allocation4], 0
      %s127 = sshll.u32 [#allocation7], 4
      %s128 = int_to_ptr.vmem [resolvable:$true] %s127
      %s129 = sshll.u32 %s2, 4
      %s130 = int_to_ptr.hbm [resolvable:$true] %s129
      %132 = dma.vmem_to_hbm [thread:$0]  %s128, 32, %s130, [#allocation4]
    $region21: #{tpu_custom_call.1} parent=1 // pred_fallthru
      _
    // Predicated region
    $region22: #{tpu_custom_call.1} parent=1 // pred_check
      _
    $region23: #{tpu_custom_call.1} parent=1 // pred_check_branch
      %134 = sbr.rel (0) target = $region25
    $region24: #{tpu_custom_call.1} parent=1 // pred_region
      %136 = dma.done [#allocation4], 32
    $region25: #{tpu_custom_call.1} parent=1 // pred_fallthru
      _
    %137 = vsyncpa [#allocation3], 1
    %138 = vsyncpa [#allocation6], 1
    %139 = vsyncpa [#allocation4], 1

</llo_original>
